<compile_context>
chip_gen: v5e
topology: v5e:2x2
jax: 0.10.0
libtpu: 0.0.40
codegen_flags: <defaults>
</compile_context>

<pallas_src>
import functools
import math

import jax
import jax.numpy as jnp
from jax.experimental import pallas as pl
from jax.experimental.pallas import tpu as pltpu

_LOG_CLAMP = -100.0     # PyTorch F.binary_cross_entropy clamps log terms at -100
_OUT_LANES = 128        # lane-dense output slab (target, concept live in lanes 0, 1)


def _clamped_log(x):
    return jnp.maximum(jnp.log(x), _LOG_CLAMP)


def cbloss_kernel(cp_ref, ct_ref, yz_ref, out_ref, *,
                  num_classes, num_logit_cols, alpha, inv_denom,
                  n_valid, batch_tile, hard_concepts):
    """One (shard, batch-tile) step: partial loss sums accumulated into out_ref."""
    shard = pl.program_id(0)
    step = pl.program_id(1)
    global_step = shard * pl.num_programs(1) + step

    # ---- Concept loss: lane-dense flat BCE (zero padding contributes exactly 0) --
    p = cp_ref[...].astype(jnp.float32)                                 # (crows, 128)
    t = ct_ref[...].astype(jnp.float32)
    if hard_concepts:
        # One log per element; valid only for hard {0,1} labels.
        bce = -jnp.maximum(jnp.log(jnp.where(t > 0.5, p, 1.0 - p)), _LOG_CLAMP)
    else:
        bce = -(t * _clamped_log(p) + (1.0 - t) * _clamped_log(1.0 - p))
    c_cols = jnp.sum(bce, axis=0, keepdims=True)                        # (1, 128) sublane reduce
    c_part = jnp.sum(c_cols, axis=1, keepdims=True)                     # (1, 1)

    # ---- Target loss: transposed lane-dense y slab (num_logit_cols+1, bt) --------
    yz = yz_ref[...].astype(jnp.float32)
    z = yz[:num_logit_cols, :]                                          # (C, bt)
    yt = yz[num_logit_cols:num_logit_cols + 1, :]                       # (1, bt)

    col = (jax.lax.broadcasted_iota(jnp.int32, (1, batch_tile), 1)
           + global_step * batch_tile)
    valid = (col < n_valid).astype(jnp.float32)                         # (1, bt)

    if num_classes == 2:
        zz = z[0:1, :] if num_logit_cols == 1 else z[1:2, :]            # (1, bt)
        # Stable softplus; min(.,100) reproduces PyTorch's -100 log clamp.
        sp = jnp.maximum(zz, 0.0) + jnp.log(1.0 + jnp.exp(-jnp.abs(zz)))
        t_rows = (yt * jnp.minimum(sp - zz, -_LOG_CLAMP)
                  + (1.0 - yt) * jnp.minimum(sp, -_LOG_CLAMP))
    else:
        m = jnp.max(z, axis=0, keepdims=True)                           # (1, bt)
        lse = m + jnp.log(jnp.sum(jnp.exp(z - m), axis=0, keepdims=True))
        labels = yt.astype(jnp.int32)                                   # (1, bt)
        cls = jax.lax.broadcasted_iota(jnp.int32, z.shape, 0)
        onehot = (cls == labels).astype(jnp.float32)
        true_logit = jnp.sum(z * onehot, axis=0, keepdims=True)
        t_rows = lse - true_logit                                       # (1, bt)
    t_part = jnp.sum(t_rows * valid, axis=1, keepdims=True)             # (1, 1)

    # ---- Scale (reduction + alpha are linear, so apply per tile) -----------------
    target_c = t_part * inv_denom
    concept_c = c_part * (alpha * inv_denom)

    # Pack the two partial scalars into the lane-dense (8, 128) accumulator block.
    lane = jax.lax.broadcasted_iota(jnp.int32, out_ref.shape, 1)
    contrib = jnp.where(lane == 0, target_c, jnp.where(lane == 1, concept_c, 0.0))

    @pl.when(step == 0)
    def _():
        out_ref[...] = contrib

    @pl.when(step > 0)
    def _():
        out_ref[...] = out_ref[...] + contrib


def _round_up(x, m):
    return ((x + m - 1) // m) * m


def _sublane_req(dtype):
    # Rows-per-tile requirement for the flat concept slab: 8 (f32), 16 (bf16/f16).
    return max(8, 32 // jnp.dtype(dtype).itemsize)


def cb_loss(c_pred_probs, c_true, y_logits, y_true, *,
            num_classes=2, reduction="mean", alpha=1.0,
            batch_tile=None, hard_concept_labels=False, num_shards=None):
    """Pallas implementation of CBLoss.forward. Returns (target, concept, total)."""
    if reduction not in ("mean", "sum"):
        raise NotImplementedError("Only reduction='mean' or 'sum' is supported.")

    # MCMC mean (if present) runs in the wrapper and fuses with the flatten below.
    if c_pred_probs.ndim == 3:
        c_pred_2d = jnp.mean(c_pred_probs.astype(jnp.float32), axis=-1)
    else:
        c_pred_2d = c_pred_probs
    if (not jnp.issubdtype(c_pred_2d.dtype, jnp.floating)
            or jnp.dtype(c_pred_2d.dtype).itemsize < 2):
        c_pred_2d = c_pred_2d.astype(jnp.float32)
    c_true_f = c_true
    if (not jnp.issubdtype(c_true_f.dtype, jnp.floating)
            or jnp.dtype(c_true_f.dtype).itemsize < 2):
        c_true_f = c_true_f.astype(jnp.float32)

    B, k = c_pred_2d.shape
    C = y_logits.shape[1]

    # Tiling constraints:
    #   * y slab is (C+1, B_pad), batch along lanes  -> batch_tile % 128 == 0
    #   * flat concept slab block rows per step must be a multiple of the sublane
    #     tile for its dtype                          -> batch_tile*k % (128*req) == 0
    req_rows = max(_sublane_req(c_pred_2d.dtype), _sublane_req(c_true_f.dtype))
    chunk = 128 * req_rows
    base = max(128, chunk // math.gcd(k, chunk))

    if batch_tile is None:
        cap = max(base, ((1 << 18) // max(k, 1)) // base * base)   # ~1 MiB concept block
        batch_tile = max(base, min(4096, cap, _round_up(B, base)))
    else:
        batch_tile = max(base, _round_up(batch_tile, base))

    steps = -(-B // batch_tile)
    if num_shards is None:
        num_shards = 2 if steps >= 2 else 1      # both TensorCores on v7x; harmless elsewhere
    num_shards = max(1, int(num_shards))
    total_steps = _round_up(steps, num_shards)
    steps_per_shard = total_steps // num_shards
    B_pad = total_steps * batch_tile

    # Lane-dense flat concept slabs (row-major; zero padding contributes 0 to BCE).
    crows_per_step = batch_tile * k // 128
    crows_total = B_pad * k // 128
    flat_pad = crows_total * 128 - B * k
    cp_slab = jnp.pad(c_pred_2d.reshape(-1), (0, flat_pad)).reshape(crows_total, 128)
    ct_slab = jnp.pad(c_true_f.reshape(-1), (0, flat_pad)).reshape(crows_total, 128)

    # Lane-dense y slab: logits and label packed into a single (C+1, B_pad) array
    # (kills the separate, 128x lane-padded (bt, 1) y_true DMA stream).
    y_col = y_true.astype(jnp.float32).reshape(1, B)
    yz = jnp.concatenate([y_logits.astype(jnp.float32).T, y_col], axis=0)
    yz = jnp.pad(yz, ((0, 0), (0, B_pad - B)))

    inv_denom = (1.0 / B) if reduction == "mean" else 1.0

    kernel = functools.partial(
        cbloss_kernel,
        num_classes=num_classes,
        num_logit_cols=C,
        alpha=float(alpha),
        inv_denom=float(inv_denom),
        n_valid=B,
        batch_tile=batch_tile,
        hard_concepts=bool(hard_concept_labels),
    )

    n_celems = crows_total * 128
    cost = pl.CostEstimate(
        flops=int(n_celems * 8 + B_pad * (10 * C + 16)),
        transcendentals=int(n_celems * (1 if hard_concept_labels else 2)
                            + B_pad * (C + 2)),
        bytes_accessed=int(cp_slab.size * cp_slab.dtype.itemsize
                           + ct_slab.size * ct_slab.dtype.itemsize
                           + yz.size * 4 + num_shards * 8 * _OUT_LANES * 4),
    )

    out = pl.pallas_call(
        kernel,
        out_shape=jax.ShapeDtypeStruct((num_shards * 8, _OUT_LANES), jnp.float32),
        grid_spec=pltpu.PrefetchScalarGridSpec(
            num_scalar_prefetch=0,
            grid=(num_shards, steps_per_shard),
            in_specs=[
                pl.BlockSpec((crows_per_step, 128),
                             lambda p, i: (p * steps_per_shard + i, 0)),   # c_pred flat
                pl.BlockSpec((crows_per_step, 128),
                             lambda p, i: (p * steps_per_shard + i, 0)),   # c_true flat
                pl.BlockSpec((C + 1, batch_tile),
                             lambda p, i: (0, p * steps_per_shard + i)),   # logits+label
            ],
            out_specs=pl.BlockSpec((8, _OUT_LANES), lambda p, i: (p, 0)),
        ),
        compiler_params=pltpu.CompilerParams(
            dimension_semantics=("parallel", "arbitrary"),
        ),
        cost_estimate=cost,
    )(cp_slab, ct_slab, yz)

    rows = out[::8]                         # (num_shards, 128): one row per shard
    target_loss = jnp.sum(rows[:, 0])
    concept_loss = jnp.sum(rows[:, 1])
    return target_loss, concept_loss, target_loss + concept_loss


def cb_loss_reference(c_pred_probs, c_true, y_logits, y_true,
                      num_classes=2, reduction="mean", alpha=1.0):
    """Pure-JAX mirror of the PyTorch CBLoss.forward (for verification)."""
    c2 = jnp.mean(c_pred_probs, axis=-1) if c_pred_probs.ndim == 3 else c_pred_probs

    def bce(p, t):
        e = -(t * jnp.maximum(jnp.log(p), _LOG_CLAMP)
              + (1.0 - t) * jnp.maximum(jnp.log(1.0 - p), _LOG_CLAMP))
        return e.mean() if reduction == "mean" else e.sum()

    concept_loss = 0.0
    for j in range(c_true.shape[1]):
        concept_loss = concept_loss + bce(c2[:, j], c_true[:, j].astype(jnp.float32))
    concept_loss = alpha * concept_loss

    if num_classes == 2:
        yp = jax.nn.sigmoid(y_logits[:, 0] if y_logits.shape[1] == 1 else y_logits[:, 1])
        target_loss = bce(yp, y_true.astype(jnp.float32))
    else:
        logz = jax.nn.log_softmax(y_logits, axis=-1)
        nll = -jnp.take_along_axis(logz, y_true.astype(jnp.int32)[:, None], axis=1)[:, 0]
        target_loss = nll.mean() if reduction == "mean" else nll.sum()

    return target_loss, concept_loss, target_loss + concept_loss


if __name__ == "__main__":
    key = jax.random.PRNGKey(0)
    ks = jax.random.split(key, 12)

    # Case 1: multi-class target, 3-D (MCMC) concept probs, multi-step grid with the
    # 2-shard "parallel" outer axis (B=300, tile=128 -> grid (2, 2), padded tail step).
    B1, K1, M1, NC1 = 300, 16, 4, 3
    cp1 = jax.nn.sigmoid(jax.random.normal(ks[0], (B1, K1, M1), jnp.float32))
    ct1 = (jax.random.uniform(ks[1], (B1, K1)) > 0.5).astype(jnp.float32)
    yl1 = jax.random.normal(ks[2], (B1, NC1), jnp.float32)
    yt1 = jax.random.randint(ks[3], (B1,), 0, NC1)
    out1 = cb_loss(cp1, ct1, yl1, yt1, num_classes=NC1, alpha=0.7, batch_tile=128)
    ref1 = cb_loss_reference(cp1, ct1, yl1, yt1, num_classes=NC1, alpha=0.7)

    # Case 2: binary target, 1-column logits, ragged tiny batch (padding + mask path),
    # hard-label 1-log concept BCE.
    B2, K2 = 10, 6
    cp2 = jax.nn.sigmoid(jax.random.normal(ks[4], (B2, K2), jnp.float32))
    ct2 = (jax.random.uniform(ks[5], (B2, K2)) > 0.5).astype(jnp.float32)
    yl2 = jax.random.normal(ks[6], (B2, 1), jnp.float32)
    yt2 = jax.random.randint(ks[7], (B2,), 0, 2)
    out2 = cb_loss(cp2, ct2, yl2, yt2, num_classes=2, alpha=1.0,
                   hard_concept_labels=True)
    ref2 = cb_loss_reference(cp2, ct2, yl2, yt2, num_classes=2, alpha=1.0)

    # Case 3: binary target with 2-column logits (sigmoid of column 1), sum-free
    # default 2-log concept path.
    B3, K3 = 8, 4
    cp3 = jax.nn.sigmoid(jax.random.normal(ks[8], (B3, K3), jnp.float32))
    ct3 = (jax.random.uniform(ks[9], (B3, K3)) > 0.5).astype(jnp.float32)
    yl3 = jax.random.normal(ks[10], (B3, 2), jnp.float32)
    yt3 = jax.random.randint(ks[11], (B3,), 0, 2)
    out3 = cb_loss(cp3, ct3, yl3, yt3, num_classes=2, alpha=2.5)
    ref3 = cb_loss_reference(cp3, ct3, yl3, yt3, num_classes=2, alpha=2.5)

    jax.block_until_ready((out1, out2, out3))

    for got, ref in ((out1, ref1), (out2, ref2), (out3, ref3)):
        for g, r in zip(got, ref):
            assert jnp.allclose(g, r, atol=1e-4, rtol=1e-4), (g, r)

    print("KERNEL_OK")
</pallas_src>

<mosaic_0001>
module attributes {stable_mosaic.version = 11 : i64} {
  func.func @cbloss_kernel(%arg0: i32, %arg1: i32, %arg2: memref<16x128xf32, #tpu.memory_space<vmem>>, %arg3: memref<16x128xf32, #tpu.memory_space<vmem>>, %arg4: memref<4x128xf32, #tpu.memory_space<vmem>>, %arg5: memref<8x128xf32, #tpu.memory_space<vmem>>) attributes {dimension_semantics = [#tpu.dimension_semantics<parallel>, #tpu.dimension_semantics<arbitrary>], iteration_bounds = array<i64: 2, 2>, scalar_prefetch = 0 : i64, scratch_operands = 0 : i64, tpu.core_type = #tpu.core_type<tc>, window_params = [{transform_indices = @transform_0, window_bounds = array<i64: 16, 128>}, {transform_indices = @transform_1, window_bounds = array<i64: 16, 128>}, {transform_indices = @transform_2, window_bounds = array<i64: 4, 128>}, {transform_indices = @transform_3, window_bounds = array<i64: 8, 128>}]} {
    %c2_i32 = arith.constant 2 : i32
    %0 = arith.muli %arg0, %c2_i32 : i32
    %1 = arith.addi %0, %arg1 : i32
    %c0 = arith.constant 0 : index
    %c0_0 = arith.constant 0 : index
    %2 = vector.load %arg2[%c0, %c0_0] : memref<16x128xf32, #tpu.memory_space<vmem>>, vector<16x128xf32>
    %c0_1 = arith.constant 0 : index
    %c0_2 = arith.constant 0 : index
    %3 = vector.load %arg3[%c0_1, %c0_2] : memref<16x128xf32, #tpu.memory_space<vmem>>, vector<16x128xf32>
    %4 = math.log %2 : vector<16x128xf32>
    %cst = arith.constant -1.000000e+02 : f32
    %5 = vector.broadcast %cst : f32 to vector<16x128xf32>
    %6 = arith.maximumf %4, %5 : vector<16x128xf32>
    %7 = arith.mulf %3, %6 : vector<16x128xf32>
    %cst_3 = arith.constant 1.000000e+00 : f32
    %8 = vector.broadcast %cst_3 : f32 to vector<16x128xf32>
    %9 = arith.subf %8, %3 : vector<16x128xf32>
    %cst_4 = arith.constant 1.000000e+00 : f32
    %10 = vector.broadcast %cst_4 : f32 to vector<16x128xf32>
    %11 = arith.subf %10, %2 : vector<16x128xf32>
    %12 = math.log %11 : vector<16x128xf32>
    %cst_5 = arith.constant -1.000000e+02 : f32
    %13 = vector.broadcast %cst_5 : f32 to vector<16x128xf32>
    %14 = arith.maximumf %12, %13 : vector<16x128xf32>
    %15 = arith.mulf %9, %14 : vector<16x128xf32>
    %16 = arith.addf %7, %15 : vector<16x128xf32>
    %cst_6 = arith.constant 0.000000e+00 : f32
    %17 = vector.broadcast %cst_6 : f32 to vector<16x128xf32>
    %18 = arith.subf %17, %16 : vector<16x128xf32>
    %cst_7 = arith.constant dense<0.000000e+00> : vector<128xf32>
    %19 = vector.multi_reduction <add>, %18, %cst_7 [0] : vector<16x128xf32> to vector<128xf32>
    %20 = vector.shape_cast %19 : vector<128xf32> to vector<1x128xf32>
    %cst_8 = arith.constant dense<0.000000e+00> : vector<1xf32>
    %21 = vector.multi_reduction <add>, %20, %cst_8 [1] : vector<1x128xf32> to vector<1xf32>
    %22 = vector.shape_cast %21 : vector<1xf32> to vector<1x1xf32>
    %c0_9 = arith.constant 0 : index
    %c0_10 = arith.constant 0 : index
    %23 = vector.load %arg4[%c0_9, %c0_10] : memref<4x128xf32, #tpu.memory_space<vmem>>, vector<4x128xf32>
    %24 = vector.extract_strided_slice %23 {offsets = [0, 0], sizes = [3, 128], strides = [1, 1]} : vector<4x128xf32> to vector<3x128xf32>
    %25 = vector.extract_strided_slice %23 {offsets = [3, 0], sizes = [1, 128], strides = [1, 1]} : vector<4x128xf32> to vector<1x128xf32>
    %26 = tpu.iota {dimensions = array<i32: 1>} : vector<1x128xi32>
    %c128_i32 = arith.constant 128 : i32
    %27 = arith.muli %1, %c128_i32 : i32
    %28 = vector.broadcast %27 : i32 to vector<1x128xi32>
    %29 = arith.addi %26, %28 : vector<1x128xi32>
    %c300_i32 = arith.constant 300 : i32
    %30 = vector.broadcast %c300_i32 : i32 to vector<1x128xi32>
    %31 = arith.cmpi slt, %29, %30 : vector<1x128xi32>
    %32 = arith.extui %31 : vector<1x128xi1> to vector<1x128xi32>
    %33 = arith.sitofp %32 : vector<1x128xi32> to vector<1x128xf32>
    %cst_11 = arith.constant dense<0xFF800000> : vector<128xf32>
    %34 = vector.multi_reduction <maximumf>, %24, %cst_11 [0] : vector<3x128xf32> to vector<128xf32>
    %35 = vector.shape_cast %34 : vector<128xf32> to vector<1x128xf32>
    %36 = vector.broadcast %35 : vector<1x128xf32> to vector<3x128xf32>
    %37 = arith.subf %24, %36 : vector<3x128xf32>
    %38 = math.exp %37 : vector<3x128xf32>
    %cst_12 = arith.constant dense<0.000000e+00> : vector<128xf32>
    %39 = vector.multi_reduction <add>, %38, %cst_12 [0] : vector<3x128xf32> to vector<128xf32>
    %40 = vector.shape_cast %39 : vector<128xf32> to vector<1x128xf32>
    %41 = math.log %40 : vector<1x128xf32>
    %42 = arith.addf %35, %41 : vector<1x128xf32>
    %43 = arith.fptosi %25 : vector<1x128xf32> to vector<1x128xi32>
    %44 = tpu.iota {dimensions = array<i32: 0>} : vector<3x128xi32>
    %45 = vector.broadcast %43 : vector<1x128xi32> to vector<3x128xi32>
    %46 = arith.cmpi eq, %44, %45 : vector<3x128xi32>
    %47 = arith.extui %46 : vector<3x128xi1> to vector<3x128xi32>
    %48 = arith.sitofp %47 : vector<3x128xi32> to vector<3x128xf32>
    %49 = arith.mulf %24, %48 : vector<3x128xf32>
    %cst_13 = arith.constant dense<0.000000e+00> : vector<128xf32>
    %50 = vector.multi_reduction <add>, %49, %cst_13 [0] : vector<3x128xf32> to vector<128xf32>
    %51 = vector.shape_cast %50 : vector<128xf32> to vector<1x128xf32>
    %52 = arith.subf %42, %51 : vector<1x128xf32>
    %53 = arith.mulf %52, %33 : vector<1x128xf32>
    %cst_14 = arith.constant dense<0.000000e+00> : vector<1xf32>
    %54 = vector.multi_reduction <add>, %53, %cst_14 [1] : vector<1x128xf32> to vector<1xf32>
    %55 = vector.shape_cast %54 : vector<1xf32> to vector<1x1xf32>
    %cst_15 = arith.constant 0.00333333341 : f32
    %56 = vector.broadcast %cst_15 : f32 to vector<1x1xf32>
    %57 = arith.mulf %55, %56 : vector<1x1xf32>
    %cst_16 = arith.constant 0.00233333325 : f32
    %58 = vector.broadcast %cst_16 : f32 to vector<1x1xf32>
    %59 = arith.mulf %22, %58 : vector<1x1xf32>
    %60 = tpu.iota {dimensions = array<i32: 1>} : vector<8x128xi32>
    %c0_i32 = arith.constant 0 : i32
    %61 = vector.broadcast %c0_i32 : i32 to vector<8x128xi32>
    %62 = arith.cmpi eq, %60, %61 : vector<8x128xi32>
    %c1_i32 = arith.constant 1 : i32
    %63 = vector.broadcast %c1_i32 : i32 to vector<8x128xi32>
    %64 = arith.cmpi eq, %60, %63 : vector<8x128xi32>
    %cst_17 = arith.constant 0.000000e+00 : f32
    %65 = vector.shape_cast %59 : vector<1x1xf32> to vector<1x1xf32>
    %66 = vector.broadcast %65 : vector<1x1xf32> to vector<8x128xf32>
    %67 = vector.broadcast %cst_17 : f32 to vector<8x128xf32>
    %68 = arith.select %64, %66, %67 : vector<8x128xi1>, vector<8x128xf32>
    %69 = vector.shape_cast %57 : vector<1x1xf32> to vector<1x1xf32>
    %70 = vector.broadcast %69 : vector<1x1xf32> to vector<8x128xf32>
    %71 = arith.select %62, %70, %68 : vector<8x128xi1>, vector<8x128xf32>
    %c0_i32_18 = arith.constant 0 : i32
    %72 = arith.cmpi eq, %arg1, %c0_i32_18 : i32
    %73 = arith.extui %72 : i1 to i32
    %c0_i32_19 = arith.constant 0 : i32
    %74 = arith.cmpi ne, %73, %c0_i32_19 : i32
    scf.if %74 {
      %c0_22 = arith.constant 0 : index
      %c0_23 = arith.constant 0 : index
      %78 = vector.load %arg5[%c0_22, %c0_23] : memref<8x128xf32, #tpu.memory_space<vmem>>, vector<8x128xf32>
      tpu.vector_store %arg5[%c0_22, %c0_23], %71 {strides = array<i32>} : memref<8x128xf32, #tpu.memory_space<vmem>>, vector<8x128xf32>,
    } else {
    }
    %c0_i32_20 = arith.constant 0 : i32
    %75 = arith.cmpi sgt, %arg1, %c0_i32_20 : i32
    %76 = arith.extui %75 : i1 to i32
    %c0_i32_21 = arith.constant 0 : i32
    %77 = arith.cmpi ne, %76, %c0_i32_21 : i32
    scf.if %77 {
      %c0_22 = arith.constant 0 : index
      %c0_23 = arith.constant 0 : index
      %78 = vector.load %arg5[%c0_22, %c0_23] : memref<8x128xf32, #tpu.memory_space<vmem>>, vector<8x128xf32>
      %79 = arith.addf %78, %71 : vector<8x128xf32>
      %c0_24 = arith.constant 0 : index
      %c0_25 = arith.constant 0 : index
      %80 = vector.load %arg5[%c0_24, %c0_25] : memref<8x128xf32, #tpu.memory_space<vmem>>, vector<8x128xf32>
      tpu.vector_store %arg5[%c0_24, %c0_25], %79 {strides = array<i32>} : memref<8x128xf32, #tpu.memory_space<vmem>>, vector<8x128xf32>,
    } else {
    }
    return
  }
  func.func @transform_0(%arg0: i32, %arg1: i32) -> (i32, i32) {
    %c2_i32 = arith.constant 2 : i32
    %0 = arith.muli %arg0, %c2_i32 : i32
    %1 = arith.addi %0, %arg1 : i32
    %c0_i32 = arith.constant 0 : i32
    %c0_i32_0 = arith.constant 0 : i32
    return %1, %c0_i32 : i32, i32
  }
  func.func @transform_1(%arg0: i32, %arg1: i32) -> (i32, i32) {
    %c2_i32 = arith.constant 2 : i32
    %0 = arith.muli %arg0, %c2_i32 : i32
    %1 = arith.addi %0, %arg1 : i32
    %c0_i32 = arith.constant 0 : i32
    %c0_i32_0 = arith.constant 0 : i32
    return %1, %c0_i32 : i32, i32
  }
  func.func @transform_2(%arg0: i32, %arg1: i32) -> (i32, i32) {
    %c2_i32 = arith.constant 2 : i32
    %0 = arith.muli %arg0, %c2_i32 : i32
    %1 = arith.addi %0, %arg1 : i32
    %c0_i32 = arith.constant 0 : i32
    %c0_i32_0 = arith.constant 0 : i32
    return %c0_i32, %1 : i32, i32
  }
  func.func @transform_3(%arg0: i32, %arg1: i32) -> (i32, i32) {
    %c0_i32 = arith.constant 0 : i32
    %c0_i32_0 = arith.constant 0 : i32
    return %arg0, %c0_i32 : i32, i32
  }
}

</mosaic_0001>

<llo_original>
// kernel: tpu_custom_call.1
$region0: #{tpu_custom_call.1}
  #allocation0 [shape = 'u32[]', space=smem, size = 0x4, offset = 0x4, fixed_abs, tag = 'smem constant byte address 0x4 - core index']
  #allocation1 [shape = 'u32[72,128]{1,0:T(1,128)}', space=vmem, size = 0x9000, scoped, tag = 'internal scratch']
  %s0 = inlined_call_operand.hbm [shape: f32[64,128], index: 0, kind: input, shape index: {}]
  %s1 = inlined_call_operand.hbm [shape: f32[64,128], index: 1, kind: input, shape index: {}]
  %s2 = inlined_call_operand.hbm [shape: f32[4,512], index: 2, kind: input, shape index: {}]
  %s3 = inlined_call_operand.hbm [shape: f32[16,128], index: 3, kind: output, shape index: {}]
  %s4 = sld [smem:[#allocation0]]
  $region65: #{tpu_custom_call.1} parent=0
    _
  %s6 = ssub.s32 1, %s4
  %s7 = scalar_select 0, %s6, %s4
  $region1: #{tpu_custom_call.1} parent=0
    #allocation2 [shape = 'u8[16384]{0}', space=vmem, size = 0x4000, scoped, tag = 'input window, operand 0']
    #allocation3 [shape = 's32[2]{0}', space=sflag, size = 0x8, scoped, tag = 'scoped memory for tpu_custom_call.1']
    #allocation4 [shape = 's32[2]{0}', space=sflag, size = 0x8, scoped, tag = 'scoped memory for tpu_custom_call.1']
    #allocation5 [shape = 'u8[16384]{0}', space=vmem, size = 0x4000, scoped, tag = 'input window, operand 1']
    #allocation6 [shape = 's32[2]{0}', space=sflag, size = 0x8, scoped, tag = 'scoped memory for tpu_custom_call.1']
    #allocation7 [shape = 'u8[4096]{0}', space=vmem, size = 0x1000, scoped, tag = 'input window, operand 2']
    #allocation8 [shape = 'u8[8192]{0}', space=vmem, size = 0x2000, scoped, tag = 'output window, operand 0']
    %8 = vsyncpa [#allocation3], 0
    %s9 = scalar_lea.sflag [#allocation3], 1
    %10 = vsyncpa %s9, 0
    %11 = vsyncpa [#allocation6], 0
    %s12 = scalar_lea.sflag [#allocation6], 1
    %13 = vsyncpa %s12, 0
    %14 = vsyncpa [#allocation4], 0
    %s15 = scalar_lea.sflag [#allocation4], 1
    %16 = vsyncpa %s15, 0
    loop: start=0, step=1, limit=6
    $region2: #{tpu_custom_call.1} parent=1 // loop_pre_header
      _
    $region3: #{tpu_custom_call.1} parent=1 // loop_header
      %s18 = sphi 0, %s22
      %p19 = scmp.ge.s32.totalorder %s18, 6
      %s25 = sphi 0, %s37
      %s26 = sphi 0, %s33
      %s27 = sphi 0, %s25
      %s28 = sphi 0, %s26
      %s29 = sphi 0, %s27
      %s30 = sphi 0, %s28
      %s44 = sphi 0, %s46
      %s47 = sphi 0, %s44
      %s48 = sphi 0, %s47
      %s64 = sphi 0, %s48
      %s74 = sphi 0, %s76
      %s77 = sphi 0, %s74
      %s78 = sphi 0, %s77
      %s94 = sphi 0, %s78
      %s104 = sphi 0, %s106
      %s107 = sphi 0, %s104
      %s108 = sphi 0, %s107
      %s124 = sphi 0, %s108
      %s130 = sphi 0, %s132
      %s133 = sphi 0, %s130
      %s134 = sphi 0, %s133
      %s150 = sphi 0, %s134
    $region4: #{tpu_custom_call.1} parent=1 // loop_header_branch
      %21 = sbr.rel (%p19) target = $region8
    $region5: #{tpu_custom_call.1} parent=1 // loop_body
      %s23 = ssub.s32 %s18, 1
      %s24 = ssub.s32 %s18, 2
      %s31 = sadd.s32 1, %s26
      %p32 = scmp.ge.s32.totalorder %s31, 2
      %s33 = scalar_select %p32, 0, %s31
      %s34 = sadd.s32 1, %s25
      %s35 = scalar_select %p32, %s34, %s25
      %p36 = scmp.ge.s32.totalorder %s35, 2
      %s37 = scalar_select %p36, 0, %s35
      %s38 = smul.u32 %s25, 2
      %s39 = sadd.s32 %s38, %s26
      %s40 = smul.u32 %s37, 2
      %s41 = sadd.s32 %s40, %s33
      %s42 = ssub.s32 %s39, %s41
      %p43 = scmp.eq.s32.totalorder %s42, 0
      %s45 = sadd.s32 %s44, 1
      %s46 = scalar_select %p43, %s44, %s45
      %p49 = pneg %p43
      %p50 = scmp.eq.s32.totalorder %s18, 3
      %p51 = por %p49, %p50
      %p52 = scmp.ne.s32.totalorder %s44, %s47
      %p53 = scmp.eq.s32.totalorder %s18, 0
      %p54 = por %p52, %p53
      %p55 = scmp.ne.s32.totalorder %s44, %s47
      %p56 = scmp.eq.s32.totalorder %s23, 3
      %p57 = por %p55, %p56
      %p58 = scmp.ne.s32.totalorder %s47, %s48
      %p59 = scmp.eq.s32.totalorder %s23, 0
      %p60 = por %p58, %p59
      %p61 = scmp.ne.s32.totalorder %s47, %s48
      %p62 = scmp.eq.s32.totalorder %s24, 3
      %p63 = por %p61, %p62
      %p65 = scmp.ne.s32.totalorder %s48, %s64
      %p66 = scmp.eq.s32.totalorder %s24, 0
      %p67 = por %p65, %p66
      %s68 = smul.u32 %s25, 2
      %s69 = sadd.s32 %s68, %s26
      %s70 = smul.u32 %s37, 2
      %s71 = sadd.s32 %s70, %s33
      %s72 = ssub.s32 %s69, %s71
      %p73 = scmp.eq.s32.totalorder %s72, 0
      %s75 = sadd.s32 %s74, 1
      %s76 = scalar_select %p73, %s74, %s75
      %p79 = pneg %p73
      %p80 = scmp.eq.s32.totalorder %s18, 3
      %p81 = por %p79, %p80
      %p82 = scmp.ne.s32.totalorder %s74, %s77
      %p83 = scmp.eq.s32.totalorder %s18, 0
      %p84 = por %p82, %p83
      %p85 = scmp.ne.s32.totalorder %s74, %s77
      %p86 = scmp.eq.s32.totalorder %s23, 3
      %p87 = por %p85, %p86
      %p88 = scmp.ne.s32.totalorder %s77, %s78
      %p89 = scmp.eq.s32.totalorder %s23, 0
      %p90 = por %p88, %p89
      %p91 = scmp.ne.s32.totalorder %s77, %s78
      %p92 = scmp.eq.s32.totalorder %s24, 3
      %p93 = por %p91, %p92
      %p95 = scmp.ne.s32.totalorder %s78, %s94
      %p96 = scmp.eq.s32.totalorder %s24, 0
      %p97 = por %p95, %p96
      %s98 = smul.u32 %s25, 2
      %s99 = sadd.s32 %s98, %s26
      %s100 = smul.u32 %s37, 2
      %s101 = sadd.s32 %s100, %s33
      %s102 = ssub.s32 %s99, %s101
      %p103 = scmp.eq.s32.totalorder %s102, 0
      %s105 = sadd.s32 %s104, 1
      %s106 = scalar_select %p103, %s104, %s105
      %p109 = pneg %p103
      %p110 = scmp.eq.s32.totalorder %s18, 3
      %p111 = por %p109, %p110
      %p112 = scmp.ne.s32.totalorder %s104, %s107
      %p113 = scmp.eq.s32.totalorder %s18, 0
      %p114 = por %p112, %p113
      %p115 = scmp.ne.s32.totalorder %s104, %s107
      %p116 = scmp.eq.s32.totalorder %s23, 3
      %p117 = por %p115, %p116
      %p118 = scmp.ne.s32.totalorder %s107, %s108
      %p119 = scmp.eq.s32.totalorder %s23, 0
      %p120 = por %p118, %p119
      %p121 = scmp.ne.s32.totalorder %s107, %s108
      %p122 = scmp.eq.s32.totalorder %s24, 3
      %p123 = por %p121, %p122
      %p125 = scmp.ne.s32.totalorder %s108, %s124
      %p126 = scmp.eq.s32.totalorder %s24, 0
      %p127 = por %p125, %p126
      %s128 = ssub.s32 %s25, %s37
      %p129 = scmp.eq.s32.totalorder %s128, 0
      %s131 = sadd.s32 %s130, 1
      %s132 = scalar_select %p129, %s130, %s131
      %p135 = pneg %p129
      %p136 = scmp.eq.s32.totalorder %s18, 3
      %p137 = por %p135, %p136
      %p138 = scmp.ne.s32.totalorder %s130, %s133
      %p139 = scmp.eq.s32.totalorder %s18, 0
      %p140 = por %p138, %p139
      %p141 = scmp.ne.s32.totalorder %s130, %s133
      %p142 = scmp.eq.s32.totalorder %s23, 3
      %p143 = por %p141, %p142
      %p144 = scmp.ne.s32.totalorder %s133, %s134
      %p145 = scmp.eq.s32.totalorder %s23, 0
      %p146 = por %p144, %p145
      %p147 = scmp.ne.s32.totalorder %s133, %s134
      %p148 = scmp.eq.s32.totalorder %s24, 3
      %p149 = por %p147, %p148
      %p151 = scmp.ne.s32.totalorder %s134, %s150
      %p152 = scmp.eq.s32.totalorder %s24, 0
      %p153 = por %p151, %p152
      %p154 = scmp.le.s32.totalorder 1, %s18
      %p155 = scmp.lt.s32.totalorder %s18, 5
      %p156 = pnand %p154, %p155
      %p157 = pneg %p156
      // Predicated region
      $region9: #{tpu_custom_call.1} parent=5 // pred_check
        _
      $region10: #{tpu_custom_call.1} parent=5 // pred_check_branch
        %159 = sbr.rel (%p156) target = $region12
      $region11: #{tpu_custom_call.1} parent=5 // pred_region
        %s160 = ssub.s32 %s18, 1
      $region12: #{tpu_custom_call.1} parent=5 // pred_fallthru
        _
      %p161 = scmp.lt.s32.totalorder %s18, 4
      // Predicated region
      $region13: #{tpu_custom_call.1} parent=5 // pred_check
        %p162 = pneg %p161
      $region14: #{tpu_custom_call.1} parent=5 // pred_check_branch
        %164 = sbr.rel (%p162) target = $region16
      $region15: #{tpu_custom_call.1} parent=5 // pred_region
        // Predicated region
        $region17: #{tpu_custom_call.1} parent=15 // pred_check
          %p165 = pneg %p54
        $region18: #{tpu_custom_call.1} parent=15 // pred_check_branch
          %167 = sbr.rel (%p165) target = $region20
        $region19: #{tpu_custom_call.1} parent=15 // pred_region
          %s168 = sand.u32 %s44, 1
          %s169 = scalar_lea.sflag [#allocation3], %s168
          %s170 = sand.u32 %s44, 1
          %s171 = smul.addr %s170, 16
          %s172 = scalar_lea.vmem [#allocation2], %s171
          %s173 = smul.u32 %s25, 2
          %s174 = sadd.s32 %s173, %s26
          %s175 = smul.u32 2, %s174
          %177 = vsyncadd %s169, 0
          %s178 = smul.addr %s175, 8
          %s179 = scalar_lea.hbm %s0, %s178
          %s180 = sshll.u32 %s179, 4
          %s181 = int_to_ptr.hbm [resolvable:$true] %s180
          %s182 = sshll.u32 %s172, 4
          %s183 = int_to_ptr.vmem [resolvable:$true] %s182
          %188 = dma.hbm_to_vmem [thread:$0]  %s181, 256, %s183, %s169, 128, 128, 8
        $region20: #{tpu_custom_call.1} parent=15 // pred_fallthru
          _
        // Predicated region
        $region21: #{tpu_custom_call.1} parent=15 // pred_check
          %p189 = pneg %p84
        $region22: #{tpu_custom_call.1} parent=15 // pred_check_branch
          %191 = sbr.rel (%p189) target = $region24
        $region23: #{tpu_custom_call.1} parent=15 // pred_region
          %s192 = sand.u32 %s18, 1
          %s193 = scalar_lea.sflag [#allocation6], %s192
          %s194 = sand.u32 %s74, 1
          %s195 = smul.addr %s194, 16
          %s196 = scalar_lea.vmem [#allocation5], %s195
          %s197 = smul.u32 %s25, 2
          %s198 = sadd.s32 %s197, %s26
          %s199 = smul.u32 2, %s198
          %201 = vsyncadd %s193, 0
          %s202 = smul.addr %s199, 8
          %s203 = scalar_lea.hbm %s1, %s202
          %s204 = sshll.u32 %s203, 4
          %s205 = int_to_ptr.hbm [resolvable:$true] %s204
          %s206 = sshll.u32 %s196, 4
          %s207 = int_to_ptr.vmem [resolvable:$true] %s206
          %212 = dma.hbm_to_vmem [thread:$0]  %s205, 256, %s207, %s193, 128, 128, 8
        $region24: #{tpu_custom_call.1} parent=15 // pred_fallthru
          _
        // Predicated region
        $region25: #{tpu_custom_call.1} parent=15 // pred_check
          %p213 = pneg %p114
        $region26: #{tpu_custom_call.1} parent=15 // pred_check_branch
          %215 = sbr.rel (%p213) target = $region28
        $region27: #{tpu_custom_call.1} parent=15 // pred_region
          %s216 = sand.u32 %s18, 1
          %s217 = scalar_lea.sflag [#allocation6], %s216
          %s218 = sand.u32 %s104, 1
          %s219 = smul.addr %s218, 4
          %s220 = scalar_lea.vmem [#allocation7], %s219
          %s221 = smul.u32 %s25, 2
          %s222 = sadd.s32 %s221, %s26
          %224 = vsyncadd %s217, 0
          %s225 = smul.addr %s222, 4
          %s226 = scalar_lea.hbm %s2, %s225
          %s228 = sshll.u32 %s226, 4
          %s229 = int_to_ptr.hbm [resolvable:$true] %s228
          %s230 = sshll.u32 %s220, 4
          %s231 = int_to_ptr.vmem [resolvable:$true] %s230
          %233 = dma.hbm_to_vmem [thread:$0]  %s229, 64, %s231, %s217
        $region28: #{tpu_custom_call.1} parent=15 // pred_fallthru
          _
      $region16: #{tpu_custom_call.1} parent=5 // pred_fallthru
        _
      %p234 = scmp.le.s32.totalorder 1, %s18
      %p235 = scmp.lt.s32.totalorder %s18, 5
      %p236 = pnand %p234, %p235
      %p237 = pneg %p236
      // Predicated region
      $region29: #{tpu_custom_call.1} parent=5 // pred_check
        _
      $region30: #{tpu_custom_call.1} parent=5 // pred_check_branch
        %239 = sbr.rel (%p236) target = $region32
      $region31: #{tpu_custom_call.1} parent=5 // pred_region
        %s240 = ssub.s32 %s18, 1
        %s241 = sand.u32 %s47, 1
        %s242 = scalar_lea.sflag [#allocation3], %s241
        %s243 = sand.u32 %s47, 1
        %s244 = smul.addr %s243, 16
        %s245 = scalar_lea.vmem [#allocation2], %s244
        // Predicated region
        $region33: #{tpu_custom_call.1} parent=31 // pred_check
          %p246 = pneg %p60
        $region34: #{tpu_custom_call.1} parent=31 // pred_check_branch
          %248 = sbr.rel (%p246) target = $region36
        $region35: #{tpu_custom_call.1} parent=31 // pred_region
          %250 = dma.done %s242, 256
        $region36: #{tpu_custom_call.1} parent=31 // pred_fallthru
          _
        %s251 = sand.u32 %s23, 1
        %s252 = scalar_lea.sflag [#allocation6], %s251
        %s253 = sand.u32 %s77, 1
        %s254 = smul.addr %s253, 16
        %s255 = scalar_lea.vmem [#allocation5], %s254
        // Predicated region
        $region37: #{tpu_custom_call.1} parent=31 // pred_check
          %p256 = pneg %p90
        $region38: #{tpu_custom_call.1} parent=31 // pred_check_branch
          %258 = sbr.rel (%p256) target = $region40
        $region39: #{tpu_custom_call.1} parent=31 // pred_region
          %260 = dma.done %s252, 256
        $region40: #{tpu_custom_call.1} parent=31 // pred_fallthru
          _
        %s261 = sand.u32 %s23, 1
        %s262 = scalar_lea.sflag [#allocation6], %s261
        %s263 = sand.u32 %s107, 1
        %s264 = smul.addr %s263, 4
        %s265 = scalar_lea.vmem [#allocation7], %s264
        // Predicated region
        $region41: #{tpu_custom_call.1} parent=31 // pred_check
          %p266 = pneg %p120
        $region42: #{tpu_custom_call.1} parent=31 // pred_check_branch
          %268 = sbr.rel (%p266) target = $region44
        $region43: #{tpu_custom_call.1} parent=31 // pred_region
          %270 = dma.done %s262, 64
        $region44: #{tpu_custom_call.1} parent=31 // pred_fallthru
          _
        %s271 = sand.u32 %s47, 1
        %s272 = scalar_lea.sflag [#allocation3], %s271
        %s273 = sand.u32 %s47, 1
        %s274 = smul.addr %s273, 16
        %s275 = scalar_lea.vmem [#allocation2], %s274
        %p276 = pneg %p60
        %p277 = pneg %p57
        %s278 = sand.u32 %s23, 1
        %s279 = scalar_lea.sflag [#allocation6], %s278
        %s280 = sand.u32 %s77, 1
        %s281 = smul.addr %s280, 16
        %s282 = scalar_lea.vmem [#allocation5], %s281
        %p283 = pneg %p90
        %p284 = pneg %p87
        %s285 = sand.u32 %s23, 1
        %s286 = scalar_lea.sflag [#allocation6], %s285
        %s287 = sand.u32 %s107, 1
        %s288 = smul.addr %s287, 4
        %s289 = scalar_lea.vmem [#allocation7], %s288
        %p290 = pneg %p120
        %p291 = pneg %p117
        %p292 = pneg %p146
        %p293 = pneg %p143
        %s294 = sand.u32 %s133, 1
        %s295 = scalar_lea.sflag [#allocation4], %s294
        %s296 = sand.u32 %s133, 1
        %s297 = smul.addr %s296, 8
        %s298 = scalar_lea.vmem [#allocation8], %s297
        %s299 = smul.u32 %s27, 2
        %s300 = sadd.s32 %s299, %s28
        %s301 = smul.u32 2, %s300
        %s302 = smul.u32 %s27, 2
        %s303 = sadd.s32 %s302, %s28
        %s304 = smul.u32 2, %s303
        %s305 = smul.u32 %s27, 2
        %s306 = sadd.s32 %s305, %s28
        %s307 = smul.u32 %s27, 2
        %s308 = sadd.s32 %s307, %s28
        %v309 = vld [vmem:[%s245] sm:$0xff]
        %v310 = vld [vmem:[%s245 + $0x8] sm:$0xff]
        %v311 = vld [vmem:[%s255] sm:$0xff]
        %v312 = vld [vmem:[%s255 + $0x8] sm:$0xff]
        %v313 = vlog2.pop %v309
        %v314 = vmul.f32 %v313, 0.6931472
        %v315 = vlog2.pop %v310
        %v316 = vmul.f32 %v315, 0.6931472
        %v317 = vmax.f32 %v314, -100.0
        %v318 = vmax.f32 %v316, -100.0
        %v319 = vmul.f32 %v311, %v317
        %v320 = vmul.f32 %v312, %v318
        %v321 = vsub.f32 1.0, %v311
        %v322 = vsub.f32 1.0, %v312
        %v323 = vsub.f32 1.0, %v309
        %v324 = vsub.f32 1.0, %v310
        %v325 = vlog2.pop %v323
        %v326 = vmul.f32 %v325, 0.6931472
        %v327 = vlog2.pop %v324
        %v328 = vmul.f32 %v327, 0.6931472
        %v329 = vmax.f32 %v326, -100.0
        %v330 = vmax.f32 %v328, -100.0
        %v331 = vmul.f32 %v321, %v329
        %v332 = vmul.f32 %v322, %v330
        %v333 = vadd.f32 %v319, %v331
        %v334 = vadd.f32 %v320, %v332
        %v335 = vsub.f32 0.0, %v333
        %v336 = vsub.f32 0.0, %v334
        %v337 = vadd.f32 %v335, %v336
        %v338 = vrot.slane %v337, 4
        %v339 = vadd.f32 %v337, %v338
        %v340 = vrot.slane %v339, 2
        %v341 = vadd.f32 %v339, %v340
        %v342 = vrot.slane %v341, 1
        %v343 = vadd.f32 %v341, %v342
        %344 = vadd.xlane.f32.xlu0 %v343
        %v345 = vpop.xlane.xlu0 %344
        %v346 = vld [vmem:[%s265] sm:$0xf]
        %v347 = vlaneseq
        %v348 = vand.u32 %v347, 127
        %s349 = smul.u32 %s308, 128
        %v350 = vstv %s349
        %v351 = vadd.s32 %v348, %v350
        %vm352 = vcmp.lt.s32.totalorder %v351, 300
        %v353 = vsel %vm352, 1, 0
        %v354 = vcvt.s32.f32 %v353
        %vm355 = vcmask 1042432
        %v356 = vsel %vm355, %v346, -inf
        %v357 = vrot.slane %v356, 4
        %v358 = vmax.f32 %v356, %v357
        %v359 = vrot.slane %v358, 2
        %v360 = vmax.f32 %v358, %v359
        %v361 = vrot.slane %v360, 1
        %v362 = vmax.f32 %v360, %v361
        %v363 = vsub.f32 %v346, %v362
        %v364 = vmul.f32 %v363, 1.442695
        %v365 = vpow.pop %v364
        %v366 = vsel %vm355, %v365, 0.0
        %v367 = vrot.slane %v366, 4
        %v368 = vadd.f32 %v366, %v367
        %v369 = vrot.slane %v368, 2
        %v370 = vadd.f32 %v368, %v369
        %v371 = vrot.slane %v370, 1
        %v372 = vadd.f32 %v370, %v371
        %v373 = vlog2.pop %v372
        %v374 = vmul.f32 %v373, 0.6931472
        %v375 = vadd.f32 %v362, %v374
        %v376 = vcvt.f32.s32.to.zero.pseudo %v346
        %v377 = vlaneseq
        %v378 = vshrl.u32 %v377, 7
        %v379 = vperm.slane %v376, 3
        %vm380 = vcmp.eq.s32.totalorder %v378, %v379
        %v381 = vsel %vm380, 1, 0
        %v382 = vcvt.s32.f32 %v381
        %v383 = vmul.f32 %v346, %v382
        %v384 = vsel %vm355, %v383, 0.0
        %v385 = vrot.slane %v384, 4
        %v386 = vadd.f32 %v384, %v385
        %v387 = vrot.slane %v386, 2
        %v388 = vadd.f32 %v386, %v387
        %v389 = vrot.slane %v388, 1
        %v390 = vadd.f32 %v388, %v389
        %v391 = vsub.f32 %v375, %v390
        %v392 = vmul.f32 %v391, %v354
        %393 = vadd.xlane.f32.xlu0 %v392
        %v394 = vpop.xlane.xlu0 %393
        %v395 = vmul.f32 %v394, 0.0033333334
        %v396 = vmul.f32 %v345, 0.0023333333
        %vm397 = vcmp.eq.s32.totalorder %v348, 0
        %vm398 = vcmp.eq.s32.totalorder %v348, 1
        %v399 = vsel %vm398, %v396, 0.0
        %v400 = vsel %vm397, %v395, %v399
        %p401 = scmp.eq.s32.totalorder %s28, 0
        // Predicated region
        $region45: #{tpu_custom_call.1} parent=31 // pred_check
          %p402 = pneg %p401
        $region46: #{tpu_custom_call.1} parent=31 // pred_check_branch
          %404 = sbr.rel (%p402) target = $region48
        $region47: #{tpu_custom_call.1} parent=31 // pred_region
          %405 = vst [vmem:[%s298] sm:$0xff] %v400
        $region48: #{tpu_custom_call.1} parent=31 // pred_fallthru
          _
        %p406 = scmp.gt.s32.totalorder %s28, 0
        // Predicated region
        $region49: #{tpu_custom_call.1} parent=31 // pred_check
          %p407 = pneg %p406
        $region50: #{tpu_custom_call.1} parent=31 // pred_check_branch
          %409 = sbr.rel (%p407) target = $region52
        $region51: #{tpu_custom_call.1} parent=31 // pred_region
          %v410 = vld [vmem:[%s298] sm:$0xff]
          %v411 = vadd.f32 %v410, %v400
          %412 = vst [vmem:[%s298] sm:$0xff] %v411
        $region52: #{tpu_custom_call.1} parent=31 // pred_fallthru
          _
        %s413 = sand.u32 %s133, 1
        %s414 = scalar_lea.sflag [#allocation4], %s413
        %s415 = sand.u32 %s133, 1
        %s416 = smul.addr %s415, 8
        %s417 = scalar_lea.vmem [#allocation8], %s416
        // Predicated region
        $region53: #{tpu_custom_call.1} parent=31 // pred_check
          %p418 = pneg %p143
        $region54: #{tpu_custom_call.1} parent=31 // pred_check_branch
          %420 = sbr.rel (%p418) target = $region56
        $region55: #{tpu_custom_call.1} parent=31 // pred_region
          %422 = vsyncadd %s414, 0
          %s423 = smul.addr %s27, 8
          %s424 = scalar_lea.hbm %s3, %s423
          %s426 = sshll.u32 %s417, 4
          %s427 = int_to_ptr.vmem [resolvable:$true] %s426
          %s428 = sshll.u32 %s424, 4
          %s429 = int_to_ptr.hbm [resolvable:$true] %s428
          %431 = dma.vmem_to_hbm [thread:$0]  %s427, 128, %s429, %s414
        $region56: #{tpu_custom_call.1} parent=31 // pred_fallthru
          _
      $region32: #{tpu_custom_call.1} parent=5 // pred_fallthru
        _
      %p432 = scmp.le.s32.totalorder 2, %s18
      // Predicated region
      $region57: #{tpu_custom_call.1} parent=5 // pred_check
        %p433 = pneg %p432
      $region58: #{tpu_custom_call.1} parent=5 // pred_check_branch
        %435 = sbr.rel (%p433) target = $region60
      $region59: #{tpu_custom_call.1} parent=5 // pred_region
        %s436 = ssub.s32 %s18, 2
        // Predicated region
        $region61: #{tpu_custom_call.1} parent=59 // pred_check
          %p437 = pneg %p149
        $region62: #{tpu_custom_call.1} parent=59 // pred_check_branch
          %439 = sbr.rel (%p437) target = $region64
        $region63: #{tpu_custom_call.1} parent=59 // pred_region
          %s440 = sand.u32 %s134, 1
          %s441 = scalar_lea.sflag [#allocation4], %s440
          %s442 = sand.u32 %s134, 1
          %s443 = smul.addr %s442, 8
          %s444 = scalar_lea.vmem [#allocation8], %s443
          %446 = dma.done %s441, 128
        $region64: #{tpu_custom_call.1} parent=59 // pred_fallthru
          _
      $region60: #{tpu_custom_call.1} parent=5 // pred_fallthru
        _
    $region6: #{tpu_custom_call.1} parent=1 // loop_footer
      %s22 = sadd.s32 1, %s18
    $region7: #{tpu_custom_call.1} parent=1 // loop_footer_branch
      %17 = sbr.rel target = $region3
    $region8: #{tpu_custom_call.1} parent=1 // loop_exit
      _
    %447 = vsyncpa [#allocation3], 1
    %s448 = scalar_lea.sflag [#allocation3], 1
    %449 = vsyncpa %s448, 1
    %450 = vsyncpa [#allocation6], 1
    %s451 = scalar_lea.sflag [#allocation6], 1
    %452 = vsyncpa %s451, 1
    %453 = vsyncpa [#allocation4], 1
    %s454 = scalar_lea.sflag [#allocation4], 1
    %455 = vsyncpa %s454, 1

</llo_original>
